<compile_context>
chip_gen: v5e
topology: v5e:2x2
jax: 0.10.0
libtpu: 0.0.40
codegen_flags: <defaults>
</compile_context>

<pallas_src>
import functools

import jax
import jax.numpy as jnp
from jax.experimental import pallas as pl
from jax.experimental.pallas import tpu as pltpu

_MIB = 1024 * 1024


def _round_up(x, m):
    return ((x + m - 1) // m) * m


def _norm_loss_kernel(p_ref, g_ref, out_ref, *, vec_lengths, T, V, eps,
                      normalize, diff_order, compute_dtype, hoist_cast):
    """p_ref / g_ref: (3, tb, T*V) VMEM blocks (channel-major, lane-dense).

    out_ref: (1, 1, 128) partial sums for this grid block; lane `l` holds the
    un-normalized error sum for vec_lengths[l].
    """
    f32 = jnp.float32

    if hoist_cast:
        # Inputs are narrower than the compute dtype: cast each channel slab
        # once per grid step, then re-slice the already-cast copies for every
        # L (instead of load+cast ~2*num_L times per element).
        p_ch = tuple(p_ref[c].astype(compute_dtype) for c in range(3))
        g_ch = tuple(g_ref[c].astype(compute_dtype) for c in range(3))

        def make_win(ch):
            def win(c, off, size):
                return jax.lax.slice_in_dim(ch[c], off, off + size, axis=1)
            return win

        p_win, g_win = make_win(p_ch), make_win(g_ch)
    else:
        def make_win(ref):
            def win(c, off, size):
                return ref[c, :, pl.ds(off, size)].astype(compute_dtype)
            return win

        p_win, g_win = make_win(p_ref), make_win(g_ref)

    lane = jax.lax.broadcasted_iota(jnp.int32, (1, 1, 128), 2)
    acc = jnp.zeros((1, 1, 128), f32)

    # Static (unrolled) loop over vec_lengths: single launch, each input read
    # from HBM exactly once and re-sliced in VMEM per L (num_L <= 16).
    for idx, L in enumerate(vec_lengths):
        size = (T - L) * V      # static
        off = L * V             # static lane offset (V is the minor dim)
        # NOTE: off is generally not 128-aligned (e.g. 16 for V=16, L=1); the
        # static slice lowers to XLU lane shifts.  If a Mosaic dump shows
        # materialized re-tiled copies instead, switch to a single
        # pltpu.roll(..., shift=-off, axis=-1) per (ref, L) + aligned slices.

        def comp(win, a, b):
            # Cross-product component: start[a] * end[b] - start[b] * end[a].
            return (win(a, 0, size) * win(b, off, size)
                    - win(b, 0, size) * win(a, off, size))

        if normalize:
            def unit_cross(win):
                x = comp(win, 1, 2)
                y = comp(win, 2, 0)
                z = comp(win, 0, 1)
                nsq = x * x + y * y + z * z
                d = eps + jnp.sqrt(nsq)               # PyTorch form: eps + ||n||
                inv = pl.reciprocal(d, approx=True)   # EUP slot, keeps VALU free
                if compute_dtype == jnp.float32:
                    inv = inv * (2.0 - d * inv)       # one Newton step -> ~f32 exact
                return x * inv, y * inv, z * inv

            px, py, pz = unit_cross(p_win)
            gx, gy, gz = unit_cross(g_win)
            dx, dy, dz = px - gx, py - gy, pz - gz
            if diff_order == 'L1':
                t = jnp.abs(dx) + jnp.abs(dy) + jnp.abs(dz)
            else:  # 'L2'
                t = jnp.sqrt(dx * dx + dy * dy + dz * dz)
        else:
            # Interleave per component: form d_c and fold its contribution
            # immediately instead of holding both full (x, y, z) triples live.
            t = None
            for a, b in ((1, 2), (2, 0), (0, 1)):
                d = comp(p_win, a, b) - comp(g_win, a, b)
                c = jnp.abs(d) if diff_order == 'L1' else d * d
                t = c if t is None else t + c
            if diff_order == 'L2':
                t = jnp.sqrt(t)

        s = jnp.sum(t.astype(f32), axis=1, keepdims=True)   # (tb, 1) lane reduce
        s = jnp.sum(s, axis=0, keepdims=True)                # (1, 1) sublane reduce
        acc = acc + jnp.where(lane == idx, s, 0.0)

    out_ref[...] = acc


def _vmem_policy():
    """Return (tile budget bytes, vmem_limit_bytes) per TPU generation."""
    budget, limit = 20 * _MIB, 32 * _MIB              # conservative fallback
    try:
        cap = pltpu.get_tpu_info().vmem_capacity_bytes
        if cap >= 96 * _MIB:                          # v5e / v6e: 128 MiB VMEM
            budget, limit = 44 * _MIB, 64 * _MIB
        else:                                         # v7x-class: 64 MiB per TC
            budget, limit = 22 * _MIB, 48 * _MIB
    except Exception:                                 # query unavailable
        pass
    return budget, limit


def _choose_blocking(B, N, in_bytes, compute_bytes, normalize, hoist_cast,
                     budget):
    """Pick (tb, Bp, nb): 8-aligned batch block, padded batch size, grid steps.

    Guarantees nb >= 2 so the BlockSpec pipeline double-buffers and a second
    TensorCore (v7x megacore) has work.
    """
    live = 18 if normalize else 10                    # peak live (tb,size) f32 temps
    bytes_per_row = N * (2 * 2 * 3 * in_bytes         # 2 inputs x 2 bufs x 3 ch
                         + (6 * compute_bytes if hoist_cast else 0)
                         + live * 4)
    cap = max(8, int(budget // bytes_per_row) // 8 * 8)   # rows per block
    Bp0 = max(16, _round_up(B, 8))                    # >= 2 sublane blocks
    nb = max(2, -(-Bp0 // cap))                       # ceil, at least 2 steps
    tb = _round_up(-(-Bp0 // nb), 8)                  # 8-aligned, <= cap
    return tb, nb * tb, nb


def norm_loss_pallas(pred_3d, gt_3d, vec_length_list, eps=1e-6,
                     normalize=False, diff_order='L1', bf16_compute=True):
    """Pallas implementation of Norm_Loss.forward (inputs are B, C=3, T, V)."""
    B, C, T, V = pred_3d.shape
    assert C == 3, "channel dim must be 3 (xyz)"
    assert gt_3d.shape == pred_3d.shape
    assert diff_order in ('L1', 'L2')
    vec_lengths = tuple(int(L) for L in vec_length_list)
    num_L = len(vec_lengths)
    # Fully unrolled in-kernel; longer lists would need a fori_loop / masked
    # max-window path (or a second 'arbitrary' grid axis) to bound code size.
    assert 0 < num_L <= 16
    assert all(0 < L < T for L in vec_lengths)
    N = T * V

    in_dtype = jnp.dtype(pred_3d.dtype)
    # bf16 math halves op counts on the saturating VALU / load slots on
    # v6e / v7x (bf16 VALU+EUP); v5e has neither, callers there should pass
    # bf16_compute=False.
    if in_dtype == jnp.dtype(jnp.bfloat16) and bf16_compute:
        compute_dtype = jnp.bfloat16
    else:
        compute_dtype = jnp.float32
    hoist_cast = in_dtype != jnp.dtype(compute_dtype)

    budget, vmem_limit = _vmem_policy()
    tb, Bp, nb = _choose_blocking(B, N, in_dtype.itemsize,
                                  jnp.dtype(compute_dtype).itemsize,
                                  normalize, hoist_cast, budget)

    # Channel-major, lane-dense layout (3, B, T*V): the time shift becomes a
    # static lane offset of L*V (V is minor, so rows never mix batches/times).
    # NOTE: this transpose is one extra HBM round-trip of each input; for the
    # memory-bound corner (single L, L1, no normalize) a channel-major producer
    # layout would avoid it.
    p = jnp.transpose(pred_3d, (1, 0, 2, 3)).reshape(3, B, N)
    g = jnp.transpose(gt_3d, (1, 0, 2, 3)).reshape(3, B, N)
    if Bp != B:
        # Zero rows contribute exactly 0 to every partial sum (cross = 0 ->
        # 0/(eps+0) = 0 on the normalized path too); denominators below use the
        # true B, so padding is loss-neutral while keeping (8,128)-legal,
        # sublane-dense blocks and nb >= 2 grid steps.
        pad = ((0, 0), (0, Bp - B), (0, 0))
        p = jnp.pad(p, pad)
        g = jnp.pad(g, pad)

    kern = functools.partial(
        _norm_loss_kernel, vec_lengths=vec_lengths, T=T, V=V, eps=eps,
        normalize=normalize, diff_order=diff_order,
        compute_dtype=compute_dtype, hoist_cast=hoist_cast)

    elems = sum(Bp * (T - L) * V for L in vec_lengths)
    flops = (52 if normalize else 28) * elems
    transcendentals = (2 * elems if normalize else 0) + \
                      (elems if diff_order == 'L2' else 0)
    bytes_accessed = 2 * 3 * Bp * N * in_dtype.itemsize + nb * 128 * 4

    partials = pl.pallas_call(
        kern,
        out_shape=jax.ShapeDtypeStruct((nb, 1, 128), jnp.float32),
        grid_spec=pltpu.PrefetchScalarGridSpec(
            num_scalar_prefetch=0,
            grid=(nb,),
            in_specs=[
                pl.BlockSpec((3, tb, N), lambda b: (0, b, 0)),
                pl.BlockSpec((3, tb, N), lambda b: (0, b, 0)),
            ],
            out_specs=pl.BlockSpec((1, 1, 128), lambda b: (b, 0, 0)),
        ),
        compiler_params=pltpu.CompilerParams(
            dimension_semantics=("parallel",),        # megacore split on v7x
            vmem_limit_bytes=int(vmem_limit),         # generation-aware
        ),
        cost_estimate=pl.CostEstimate(
            flops=int(flops),
            transcendentals=int(transcendentals),
            bytes_accessed=int(bytes_accessed),
        ),
    )(p, g)

    # Tiny final reduction over grid blocks + mean normalization (plain XLA).
    sums = jnp.sum(partials[:, 0, :num_L], axis=0)    # (num_L,) totals
    errs = []
    for idx, L in enumerate(vec_lengths):
        Tm = T - L
        if diff_order == 'L1':
            denom = B * 3 * Tm * V      # mean over (B, 3, Tm, V)
        else:
            denom = B * Tm * V          # mean over (B, Tm, V) after norm(dim=1)
        errs.append(sums[idx] / denom)
    return sum(errs) / len(errs)


def norm_loss_ref(pred_3d, gt_3d, vec_length_list,
                  eps=1e-6, normalize=False, diff_order='L1'):
    """Pure-JAX reference mirroring the PyTorch module."""
    def normal(pose, L):
        start = pose[:, :, :-L, :]
        end = pose[:, :, L:, :]
        x = start[:, 1] * end[:, 2] - start[:, 2] * end[:, 1]
        y = start[:, 2] * end[:, 0] - start[:, 0] * end[:, 2]
        z = start[:, 0] * end[:, 1] - start[:, 1] * end[:, 0]
        n = jnp.stack([x, y, z], axis=1)
        if normalize:
            n = n / (eps + jnp.linalg.norm(n, axis=1, keepdims=True))
        return n

    errs = []
    for L in vec_length_list:
        e = normal(pred_3d, L) - normal(gt_3d, L)
        if diff_order == 'L1':
            errs.append(jnp.mean(jnp.abs(e)))
        else:
            errs.append(jnp.mean(jnp.linalg.norm(e, axis=1)))
    return sum(errs) / len(errs)


if __name__ == "__main__":
    key = jax.random.PRNGKey(0)
    k1, k2 = jax.random.split(key)
    # BCTV: batch=2, channels=3 (xyz), time=16, vertices(joints)=16
    pred_3d = jax.random.normal(k1, (2, 3, 16, 16), dtype=jnp.float32)
    gt_3d = jax.random.normal(k2, (2, 3, 16, 16), dtype=jnp.float32)
    vec_length_list = [1, 2]

    for normalize in (False, True):
        for diff_order in ('L1', 'L2'):
            out = norm_loss_pallas(pred_3d, gt_3d, vec_length_list,
                                   normalize=normalize, diff_order=diff_order)
            out = jax.block_until_ready(out)
            ref = norm_loss_ref(pred_3d, gt_3d, vec_length_list,
                                normalize=normalize, diff_order=diff_order)
            assert abs(float(out) - float(ref)) < 2e-4, (
                normalize, diff_order, float(out), float(ref))

    print("KERNEL_OK")
</pallas_src>

<mosaic_0001>
module attributes {stable_mosaic.version = 11 : i64} {
  func.func @_norm_loss_kernel(%arg0: i32, %arg1: memref<3x8x256xf32, #tpu.memory_space<vmem>>, %arg2: memref<3x8x256xf32, #tpu.memory_space<vmem>>, %arg3: memref<1x1x128xf32, #tpu.memory_space<vmem>>) attributes {dimension_semantics = [#tpu.dimension_semantics<parallel>], iteration_bounds = array<i64: 2>, scalar_prefetch = 0 : i64, scratch_operands = 0 : i64, tpu.core_type = #tpu.core_type<tc>, window_params = [{transform_indices = @transform_0, window_bounds = array<i64: 3, 8, 256>}, {transform_indices = @transform_1, window_bounds = array<i64: 3, 8, 256>}, {transform_indices = @transform_2, window_bounds = array<i64: 1, 1, 128>}]} {
    %0 = tpu.iota {dimensions = array<i32: 2>} : vector<1x1x128xi32>
    %cst = arith.constant 0.000000e+00 : f32
    %1 = vector.broadcast %cst : f32 to vector<1x1x128xf32>
    %c1 = arith.constant 1 : index
    %c0 = arith.constant 0 : index
    %c0_0 = arith.constant 0 : index
    %2 = vector.load %arg1[%c1, %c0, %c0_0] : memref<3x8x256xf32, #tpu.memory_space<vmem>>, vector<1x8x240xf32>
    %3 = vector.shape_cast %2 : vector<1x8x240xf32> to vector<8x240xf32>
    %c2 = arith.constant 2 : index
    %c0_1 = arith.constant 0 : index
    %c16 = arith.constant 16 : index
    %4 = vector.load %arg1[%c2, %c0_1, %c16] : memref<3x8x256xf32, #tpu.memory_space<vmem>>, vector<1x8x240xf32>
    %5 = vector.shape_cast %4 : vector<1x8x240xf32> to vector<8x240xf32>
    %6 = arith.mulf %3, %5 : vector<8x240xf32>
    %c2_2 = arith.constant 2 : index
    %c0_3 = arith.constant 0 : index
    %c0_4 = arith.constant 0 : index
    %7 = vector.load %arg1[%c2_2, %c0_3, %c0_4] : memref<3x8x256xf32, #tpu.memory_space<vmem>>, vector<1x8x240xf32>
    %8 = vector.shape_cast %7 : vector<1x8x240xf32> to vector<8x240xf32>
    %c1_5 = arith.constant 1 : index
    %c0_6 = arith.constant 0 : index
    %c16_7 = arith.constant 16 : index
    %9 = vector.load %arg1[%c1_5, %c0_6, %c16_7] : memref<3x8x256xf32, #tpu.memory_space<vmem>>, vector<1x8x240xf32>
    %10 = vector.shape_cast %9 : vector<1x8x240xf32> to vector<8x240xf32>
    %11 = arith.mulf %8, %10 : vector<8x240xf32>
    %12 = arith.subf %6, %11 : vector<8x240xf32>
    %c1_8 = arith.constant 1 : index
    %c0_9 = arith.constant 0 : index
    %c0_10 = arith.constant 0 : index
    %13 = vector.load %arg2[%c1_8, %c0_9, %c0_10] : memref<3x8x256xf32, #tpu.memory_space<vmem>>, vector<1x8x240xf32>
    %14 = vector.shape_cast %13 : vector<1x8x240xf32> to vector<8x240xf32>
    %c2_11 = arith.constant 2 : index
    %c0_12 = arith.constant 0 : index
    %c16_13 = arith.constant 16 : index
    %15 = vector.load %arg2[%c2_11, %c0_12, %c16_13] : memref<3x8x256xf32, #tpu.memory_space<vmem>>, vector<1x8x240xf32>
    %16 = vector.shape_cast %15 : vector<1x8x240xf32> to vector<8x240xf32>
    %17 = arith.mulf %14, %16 : vector<8x240xf32>
    %c2_14 = arith.constant 2 : index
    %c0_15 = arith.constant 0 : index
    %c0_16 = arith.constant 0 : index
    %18 = vector.load %arg2[%c2_14, %c0_15, %c0_16] : memref<3x8x256xf32, #tpu.memory_space<vmem>>, vector<1x8x240xf32>
    %19 = vector.shape_cast %18 : vector<1x8x240xf32> to vector<8x240xf32>
    %c1_17 = arith.constant 1 : index
    %c0_18 = arith.constant 0 : index
    %c16_19 = arith.constant 16 : index
    %20 = vector.load %arg2[%c1_17, %c0_18, %c16_19] : memref<3x8x256xf32, #tpu.memory_space<vmem>>, vector<1x8x240xf32>
    %21 = vector.shape_cast %20 : vector<1x8x240xf32> to vector<8x240xf32>
    %22 = arith.mulf %19, %21 : vector<8x240xf32>
    %23 = arith.subf %17, %22 : vector<8x240xf32>
    %24 = arith.subf %12, %23 : vector<8x240xf32>
    %25 = math.absf %24 : vector<8x240xf32>
    %c2_20 = arith.constant 2 : index
    %c0_21 = arith.constant 0 : index
    %c0_22 = arith.constant 0 : index
    %26 = vector.load %arg1[%c2_20, %c0_21, %c0_22] : memref<3x8x256xf32, #tpu.memory_space<vmem>>, vector<1x8x240xf32>
    %27 = vector.shape_cast %26 : vector<1x8x240xf32> to vector<8x240xf32>
    %c0_23 = arith.constant 0 : index
    %c0_24 = arith.constant 0 : index
    %c16_25 = arith.constant 16 : index
    %28 = vector.load %arg1[%c0_23, %c0_24, %c16_25] : memref<3x8x256xf32, #tpu.memory_space<vmem>>, vector<1x8x240xf32>
    %29 = vector.shape_cast %28 : vector<1x8x240xf32> to vector<8x240xf32>
    %30 = arith.mulf %27, %29 : vector<8x240xf32>
    %c0_26 = arith.constant 0 : index
    %c0_27 = arith.constant 0 : index
    %c0_28 = arith.constant 0 : index
    %31 = vector.load %arg1[%c0_26, %c0_27, %c0_28] : memref<3x8x256xf32, #tpu.memory_space<vmem>>, vector<1x8x240xf32>
    %32 = vector.shape_cast %31 : vector<1x8x240xf32> to vector<8x240xf32>
    %c2_29 = arith.constant 2 : index
    %c0_30 = arith.constant 0 : index
    %c16_31 = arith.constant 16 : index
    %33 = vector.load %arg1[%c2_29, %c0_30, %c16_31] : memref<3x8x256xf32, #tpu.memory_space<vmem>>, vector<1x8x240xf32>
    %34 = vector.shape_cast %33 : vector<1x8x240xf32> to vector<8x240xf32>
    %35 = arith.mulf %32, %34 : vector<8x240xf32>
    %36 = arith.subf %30, %35 : vector<8x240xf32>
    %c2_32 = arith.constant 2 : index
    %c0_33 = arith.constant 0 : index
    %c0_34 = arith.constant 0 : index
    %37 = vector.load %arg2[%c2_32, %c0_33, %c0_34] : memref<3x8x256xf32, #tpu.memory_space<vmem>>, vector<1x8x240xf32>
    %38 = vector.shape_cast %37 : vector<1x8x240xf32> to vector<8x240xf32>
    %c0_35 = arith.constant 0 : index
    %c0_36 = arith.constant 0 : index
    %c16_37 = arith.constant 16 : index
    %39 = vector.load %arg2[%c0_35, %c0_36, %c16_37] : memref<3x8x256xf32, #tpu.memory_space<vmem>>, vector<1x8x240xf32>
    %40 = vector.shape_cast %39 : vector<1x8x240xf32> to vector<8x240xf32>
    %41 = arith.mulf %38, %40 : vector<8x240xf32>
    %c0_38 = arith.constant 0 : index
    %c0_39 = arith.constant 0 : index
    %c0_40 = arith.constant 0 : index
    %42 = vector.load %arg2[%c0_38, %c0_39, %c0_40] : memref<3x8x256xf32, #tpu.memory_space<vmem>>, vector<1x8x240xf32>
    %43 = vector.shape_cast %42 : vector<1x8x240xf32> to vector<8x240xf32>
    %c2_41 = arith.constant 2 : index
    %c0_42 = arith.constant 0 : index
    %c16_43 = arith.constant 16 : index
    %44 = vector.load %arg2[%c2_41, %c0_42, %c16_43] : memref<3x8x256xf32, #tpu.memory_space<vmem>>, vector<1x8x240xf32>
    %45 = vector.shape_cast %44 : vector<1x8x240xf32> to vector<8x240xf32>
    %46 = arith.mulf %43, %45 : vector<8x240xf32>
    %47 = arith.subf %41, %46 : vector<8x240xf32>
    %48 = arith.subf %36, %47 : vector<8x240xf32>
    %49 = math.absf %48 : vector<8x240xf32>
    %50 = arith.addf %25, %49 : vector<8x240xf32>
    %c0_44 = arith.constant 0 : index
    %c0_45 = arith.constant 0 : index
    %c0_46 = arith.constant 0 : index
    %51 = vector.load %arg1[%c0_44, %c0_45, %c0_46] : memref<3x8x256xf32, #tpu.memory_space<vmem>>, vector<1x8x240xf32>
    %52 = vector.shape_cast %51 : vector<1x8x240xf32> to vector<8x240xf32>
    %c1_47 = arith.constant 1 : index
    %c0_48 = arith.constant 0 : index
    %c16_49 = arith.constant 16 : index
    %53 = vector.load %arg1[%c1_47, %c0_48, %c16_49] : memref<3x8x256xf32, #tpu.memory_space<vmem>>, vector<1x8x240xf32>
    %54 = vector.shape_cast %53 : vector<1x8x240xf32> to vector<8x240xf32>
    %55 = arith.mulf %52, %54 : vector<8x240xf32>
    %c1_50 = arith.constant 1 : index
    %c0_51 = arith.constant 0 : index
    %c0_52 = arith.constant 0 : index
    %56 = vector.load %arg1[%c1_50, %c0_51, %c0_52] : memref<3x8x256xf32, #tpu.memory_space<vmem>>, vector<1x8x240xf32>
    %57 = vector.shape_cast %56 : vector<1x8x240xf32> to vector<8x240xf32>
    %c0_53 = arith.constant 0 : index
    %c0_54 = arith.constant 0 : index
    %c16_55 = arith.constant 16 : index
    %58 = vector.load %arg1[%c0_53, %c0_54, %c16_55] : memref<3x8x256xf32, #tpu.memory_space<vmem>>, vector<1x8x240xf32>
    %59 = vector.shape_cast %58 : vector<1x8x240xf32> to vector<8x240xf32>
    %60 = arith.mulf %57, %59 : vector<8x240xf32>
    %61 = arith.subf %55, %60 : vector<8x240xf32>
    %c0_56 = arith.constant 0 : index
    %c0_57 = arith.constant 0 : index
    %c0_58 = arith.constant 0 : index
    %62 = vector.load %arg2[%c0_56, %c0_57, %c0_58] : memref<3x8x256xf32, #tpu.memory_space<vmem>>, vector<1x8x240xf32>
    %63 = vector.shape_cast %62 : vector<1x8x240xf32> to vector<8x240xf32>
    %c1_59 = arith.constant 1 : index
    %c0_60 = arith.constant 0 : index
    %c16_61 = arith.constant 16 : index
    %64 = vector.load %arg2[%c1_59, %c0_60, %c16_61] : memref<3x8x256xf32, #tpu.memory_space<vmem>>, vector<1x8x240xf32>
    %65 = vector.shape_cast %64 : vector<1x8x240xf32> to vector<8x240xf32>
    %66 = arith.mulf %63, %65 : vector<8x240xf32>
    %c1_62 = arith.constant 1 : index
    %c0_63 = arith.constant 0 : index
    %c0_64 = arith.constant 0 : index
    %67 = vector.load %arg2[%c1_62, %c0_63, %c0_64] : memref<3x8x256xf32, #tpu.memory_space<vmem>>, vector<1x8x240xf32>
    %68 = vector.shape_cast %67 : vector<1x8x240xf32> to vector<8x240xf32>
    %c0_65 = arith.constant 0 : index
    %c0_66 = arith.constant 0 : index
    %c16_67 = arith.constant 16 : index
    %69 = vector.load %arg2[%c0_65, %c0_66, %c16_67] : memref<3x8x256xf32, #tpu.memory_space<vmem>>, vector<1x8x240xf32>
    %70 = vector.shape_cast %69 : vector<1x8x240xf32> to vector<8x240xf32>
    %71 = arith.mulf %68, %70 : vector<8x240xf32>
    %72 = arith.subf %66, %71 : vector<8x240xf32>
    %73 = arith.subf %61, %72 : vector<8x240xf32>
    %74 = math.absf %73 : vector<8x240xf32>
    %75 = arith.addf %50, %74 : vector<8x240xf32>
    %cst_68 = arith.constant dense<0.000000e+00> : vector<8xf32>
    %76 = vector.multi_reduction <add>, %75, %cst_68 [1] : vector<8x240xf32> to vector<8xf32>
    %77 = vector.shape_cast %76 : vector<8xf32> to vector<8x1xf32>
    %cst_69 = arith.constant dense<0.000000e+00> : vector<1xf32>
    %78 = vector.multi_reduction <add>, %77, %cst_69 [0] : vector<8x1xf32> to vector<1xf32>
    %79 = vector.shape_cast %78 : vector<1xf32> to vector<1x1xf32>
    %c0_i32 = arith.constant 0 : i32
    %80 = vector.broadcast %c0_i32 : i32 to vector<1x1x128xi32>
    %81 = arith.cmpi eq, %0, %80 : vector<1x1x128xi32>
    %cst_70 = arith.constant 0.000000e+00 : f32
    %82 = vector.shape_cast %79 : vector<1x1xf32> to vector<1x1x1xf32>
    %83 = vector.broadcast %82 : vector<1x1x1xf32> to vector<1x1x128xf32>
    %84 = vector.broadcast %cst_70 : f32 to vector<1x1x128xf32>
    %85 = arith.select %81, %83, %84 : vector<1x1x128xi1>, vector<1x1x128xf32>
    %86 = arith.addf %1, %85 : vector<1x1x128xf32>
    %c1_71 = arith.constant 1 : index
    %c0_72 = arith.constant 0 : index
    %c0_73 = arith.constant 0 : index
    %87 = vector.load %arg1[%c1_71, %c0_72, %c0_73] : memref<3x8x256xf32, #tpu.memory_space<vmem>>, vector<1x8x224xf32>
    %88 = vector.shape_cast %87 : vector<1x8x224xf32> to vector<8x224xf32>
    %c2_74 = arith.constant 2 : index
    %c0_75 = arith.constant 0 : index
    %c32 = arith.constant 32 : index
    %89 = vector.load %arg1[%c2_74, %c0_75, %c32] : memref<3x8x256xf32, #tpu.memory_space<vmem>>, vector<1x8x224xf32>
    %90 = vector.shape_cast %89 : vector<1x8x224xf32> to vector<8x224xf32>
    %91 = arith.mulf %88, %90 : vector<8x224xf32>
    %c2_76 = arith.constant 2 : index
    %c0_77 = arith.constant 0 : index
    %c0_78 = arith.constant 0 : index
    %92 = vector.load %arg1[%c2_76, %c0_77, %c0_78] : memref<3x8x256xf32, #tpu.memory_space<vmem>>, vector<1x8x224xf32>
    %93 = vector.shape_cast %92 : vector<1x8x224xf32> to vector<8x224xf32>
    %c1_79 = arith.constant 1 : index
    %c0_80 = arith.constant 0 : index
    %c32_81 = arith.constant 32 : index
    %94 = vector.load %arg1[%c1_79, %c0_80, %c32_81] : memref<3x8x256xf32, #tpu.memory_space<vmem>>, vector<1x8x224xf32>
    %95 = vector.shape_cast %94 : vector<1x8x224xf32> to vector<8x224xf32>
    %96 = arith.mulf %93, %95 : vector<8x224xf32>
    %97 = arith.subf %91, %96 : vector<8x224xf32>
    %c1_82 = arith.constant 1 : index
    %c0_83 = arith.constant 0 : index
    %c0_84 = arith.constant 0 : index
    %98 = vector.load %arg2[%c1_82, %c0_83, %c0_84] : memref<3x8x256xf32, #tpu.memory_space<vmem>>, vector<1x8x224xf32>
    %99 = vector.shape_cast %98 : vector<1x8x224xf32> to vector<8x224xf32>
    %c2_85 = arith.constant 2 : index
    %c0_86 = arith.constant 0 : index
    %c32_87 = arith.constant 32 : index
    %100 = vector.load %arg2[%c2_85, %c0_86, %c32_87] : memref<3x8x256xf32, #tpu.memory_space<vmem>>, vector<1x8x224xf32>
    %101 = vector.shape_cast %100 : vector<1x8x224xf32> to vector<8x224xf32>
    %102 = arith.mulf %99, %101 : vector<8x224xf32>
    %c2_88 = arith.constant 2 : index
    %c0_89 = arith.constant 0 : index
    %c0_90 = arith.constant 0 : index
    %103 = vector.load %arg2[%c2_88, %c0_89, %c0_90] : memref<3x8x256xf32, #tpu.memory_space<vmem>>, vector<1x8x224xf32>
    %104 = vector.shape_cast %103 : vector<1x8x224xf32> to vector<8x224xf32>
    %c1_91 = arith.constant 1 : index
    %c0_92 = arith.constant 0 : index
    %c32_93 = arith.constant 32 : index
    %105 = vector.load %arg2[%c1_91, %c0_92, %c32_93] : memref<3x8x256xf32, #tpu.memory_space<vmem>>, vector<1x8x224xf32>
    %106 = vector.shape_cast %105 : vector<1x8x224xf32> to vector<8x224xf32>
    %107 = arith.mulf %104, %106 : vector<8x224xf32>
    %108 = arith.subf %102, %107 : vector<8x224xf32>
    %109 = arith.subf %97, %108 : vector<8x224xf32>
    %110 = math.absf %109 : vector<8x224xf32>
    %c2_94 = arith.constant 2 : index
    %c0_95 = arith.constant 0 : index
    %c0_96 = arith.constant 0 : index
    %111 = vector.load %arg1[%c2_94, %c0_95, %c0_96] : memref<3x8x256xf32, #tpu.memory_space<vmem>>, vector<1x8x224xf32>
    %112 = vector.shape_cast %111 : vector<1x8x224xf32> to vector<8x224xf32>
    %c0_97 = arith.constant 0 : index
    %c0_98 = arith.constant 0 : index
    %c32_99 = arith.constant 32 : index
    %113 = vector.load %arg1[%c0_97, %c0_98, %c32_99] : memref<3x8x256xf32, #tpu.memory_space<vmem>>, vector<1x8x224xf32>
    %114 = vector.shape_cast %113 : vector<1x8x224xf32> to vector<8x224xf32>
    %115 = arith.mulf %112, %114 : vector<8x224xf32>
    %c0_100 = arith.constant 0 : index
    %c0_101 = arith.constant 0 : index
    %c0_102 = arith.constant 0 : index
    %116 = vector.load %arg1[%c0_100, %c0_101, %c0_102] : memref<3x8x256xf32, #tpu.memory_space<vmem>>, vector<1x8x224xf32>
    %117 = vector.shape_cast %116 : vector<1x8x224xf32> to vector<8x224xf32>
    %c2_103 = arith.constant 2 : index
    %c0_104 = arith.constant 0 : index
    %c32_105 = arith.constant 32 : index
    %118 = vector.load %arg1[%c2_103, %c0_104, %c32_105] : memref<3x8x256xf32, #tpu.memory_space<vmem>>, vector<1x8x224xf32>
    %119 = vector.shape_cast %118 : vector<1x8x224xf32> to vector<8x224xf32>
    %120 = arith.mulf %117, %119 : vector<8x224xf32>
    %121 = arith.subf %115, %120 : vector<8x224xf32>
    %c2_106 = arith.constant 2 : index
    %c0_107 = arith.constant 0 : index
    %c0_108 = arith.constant 0 : index
    %122 = vector.load %arg2[%c2_106, %c0_107, %c0_108] : memref<3x8x256xf32, #tpu.memory_space<vmem>>, vector<1x8x224xf32>
    %123 = vector.shape_cast %122 : vector<1x8x224xf32> to vector<8x224xf32>
    %c0_109 = arith.constant 0 : index
    %c0_110 = arith.constant 0 : index
    %c32_111 = arith.constant 32 : index
    %124 = vector.load %arg2[%c0_109, %c0_110, %c32_111] : memref<3x8x256xf32, #tpu.memory_space<vmem>>, vector<1x8x224xf32>
    %125 = vector.shape_cast %124 : vector<1x8x224xf32> to vector<8x224xf32>
    %126 = arith.mulf %123, %125 : vector<8x224xf32>
    %c0_112 = arith.constant 0 : index
    %c0_113 = arith.constant 0 : index
    %c0_114 = arith.constant 0 : index
    %127 = vector.load %arg2[%c0_112, %c0_113, %c0_114] : memref<3x8x256xf32, #tpu.memory_space<vmem>>, vector<1x8x224xf32>
    %128 = vector.shape_cast %127 : vector<1x8x224xf32> to vector<8x224xf32>
    %c2_115 = arith.constant 2 : index
    %c0_116 = arith.constant 0 : index
    %c32_117 = arith.constant 32 : index
    %129 = vector.load %arg2[%c2_115, %c0_116, %c32_117] : memref<3x8x256xf32, #tpu.memory_space<vmem>>, vector<1x8x224xf32>
    %130 = vector.shape_cast %129 : vector<1x8x224xf32> to vector<8x224xf32>
    %131 = arith.mulf %128, %130 : vector<8x224xf32>
    %132 = arith.subf %126, %131 : vector<8x224xf32>
    %133 = arith.subf %121, %132 : vector<8x224xf32>
    %134 = math.absf %133 : vector<8x224xf32>
    %135 = arith.addf %110, %134 : vector<8x224xf32>
    %c0_118 = arith.constant 0 : index
    %c0_119 = arith.constant 0 : index
    %c0_120 = arith.constant 0 : index
    %136 = vector.load %arg1[%c0_118, %c0_119, %c0_120] : memref<3x8x256xf32, #tpu.memory_space<vmem>>, vector<1x8x224xf32>
    %137 = vector.shape_cast %136 : vector<1x8x224xf32> to vector<8x224xf32>
    %c1_121 = arith.constant 1 : index
    %c0_122 = arith.constant 0 : index
    %c32_123 = arith.constant 32 : index
    %138 = vector.load %arg1[%c1_121, %c0_122, %c32_123] : memref<3x8x256xf32, #tpu.memory_space<vmem>>, vector<1x8x224xf32>
    %139 = vector.shape_cast %138 : vector<1x8x224xf32> to vector<8x224xf32>
    %140 = arith.mulf %137, %139 : vector<8x224xf32>
    %c1_124 = arith.constant 1 : index
    %c0_125 = arith.constant 0 : index
    %c0_126 = arith.constant 0 : index
    %141 = vector.load %arg1[%c1_124, %c0_125, %c0_126] : memref<3x8x256xf32, #tpu.memory_space<vmem>>, vector<1x8x224xf32>
    %142 = vector.shape_cast %141 : vector<1x8x224xf32> to vector<8x224xf32>
    %c0_127 = arith.constant 0 : index
    %c0_128 = arith.constant 0 : index
    %c32_129 = arith.constant 32 : index
    %143 = vector.load %arg1[%c0_127, %c0_128, %c32_129] : memref<3x8x256xf32, #tpu.memory_space<vmem>>, vector<1x8x224xf32>
    %144 = vector.shape_cast %143 : vector<1x8x224xf32> to vector<8x224xf32>
    %145 = arith.mulf %142, %144 : vector<8x224xf32>
    %146 = arith.subf %140, %145 : vector<8x224xf32>
    %c0_130 = arith.constant 0 : index
    %c0_131 = arith.constant 0 : index
    %c0_132 = arith.constant 0 : index
    %147 = vector.load %arg2[%c0_130, %c0_131, %c0_132] : memref<3x8x256xf32, #tpu.memory_space<vmem>>, vector<1x8x224xf32>
    %148 = vector.shape_cast %147 : vector<1x8x224xf32> to vector<8x224xf32>
    %c1_133 = arith.constant 1 : index
    %c0_134 = arith.constant 0 : index
    %c32_135 = arith.constant 32 : index
    %149 = vector.load %arg2[%c1_133, %c0_134, %c32_135] : memref<3x8x256xf32, #tpu.memory_space<vmem>>, vector<1x8x224xf32>
    %150 = vector.shape_cast %149 : vector<1x8x224xf32> to vector<8x224xf32>
    %151 = arith.mulf %148, %150 : vector<8x224xf32>
    %c1_136 = arith.constant 1 : index
    %c0_137 = arith.constant 0 : index
    %c0_138 = arith.constant 0 : index
    %152 = vector.load %arg2[%c1_136, %c0_137, %c0_138] : memref<3x8x256xf32, #tpu.memory_space<vmem>>, vector<1x8x224xf32>
    %153 = vector.shape_cast %152 : vector<1x8x224xf32> to vector<8x224xf32>
    %c0_139 = arith.constant 0 : index
    %c0_140 = arith.constant 0 : index
    %c32_141 = arith.constant 32 : index
    %154 = vector.load %arg2[%c0_139, %c0_140, %c32_141] : memref<3x8x256xf32, #tpu.memory_space<vmem>>, vector<1x8x224xf32>
    %155 = vector.shape_cast %154 : vector<1x8x224xf32> to vector<8x224xf32>
    %156 = arith.mulf %153, %155 : vector<8x224xf32>
    %157 = arith.subf %151, %156 : vector<8x224xf32>
    %158 = arith.subf %146, %157 : vector<8x224xf32>
    %159 = math.absf %158 : vector<8x224xf32>
    %160 = arith.addf %135, %159 : vector<8x224xf32>
    %cst_142 = arith.constant dense<0.000000e+00> : vector<8xf32>
    %161 = vector.multi_reduction <add>, %160, %cst_142 [1] : vector<8x224xf32> to vector<8xf32>
    %162 = vector.shape_cast %161 : vector<8xf32> to vector<8x1xf32>
    %cst_143 = arith.constant dense<0.000000e+00> : vector<1xf32>
    %163 = vector.multi_reduction <add>, %162, %cst_143 [0] : vector<8x1xf32> to vector<1xf32>
    %164 = vector.shape_cast %163 : vector<1xf32> to vector<1x1xf32>
    %c1_i32 = arith.constant 1 : i32
    %165 = vector.broadcast %c1_i32 : i32 to vector<1x1x128xi32>
    %166 = arith.cmpi eq, %0, %165 : vector<1x1x128xi32>
    %cst_144 = arith.constant 0.000000e+00 : f32
    %167 = vector.shape_cast %164 : vector<1x1xf32> to vector<1x1x1xf32>
    %168 = vector.broadcast %167 : vector<1x1x1xf32> to vector<1x1x128xf32>
    %169 = vector.broadcast %cst_144 : f32 to vector<1x1x128xf32>
    %170 = arith.select %166, %168, %169 : vector<1x1x128xi1>, vector<1x1x128xf32>
    %171 = arith.addf %86, %170 : vector<1x1x128xf32>
    %c0_145 = arith.constant 0 : index
    %c0_146 = arith.constant 0 : index
    %c0_147 = arith.constant 0 : index
    %172 = vector.load %arg3[%c0_145, %c0_146, %c0_147] : memref<1x1x128xf32, #tpu.memory_space<vmem>>, vector<1x1x128xf32>
    tpu.vector_store %arg3[%c0_145, %c0_146, %c0_147], %171 {strides = array<i32>} : memref<1x1x128xf32, #tpu.memory_space<vmem>>, vector<1x1x128xf32>,
    return
  }
  func.func @transform_0(%arg0: i32) -> (i32, i32, i32) {
    %c0_i32 = arith.constant 0 : i32
    %c0_i32_0 = arith.constant 0 : i32
    %c0_i32_1 = arith.constant 0 : i32
    return %c0_i32, %arg0, %c0_i32_0 : i32, i32, i32
  }
  func.func @transform_1(%arg0: i32) -> (i32, i32, i32) {
    %c0_i32 = arith.constant 0 : i32
    %c0_i32_0 = arith.constant 0 : i32
    %c0_i32_1 = arith.constant 0 : i32
    return %c0_i32, %arg0, %c0_i32_0 : i32, i32, i32
  }
  func.func @transform_2(%arg0: i32) -> (i32, i32, i32) {
    %c0_i32 = arith.constant 0 : i32
    %c0_i32_0 = arith.constant 0 : i32
    %c0_i32_1 = arith.constant 0 : i32
    return %arg0, %c0_i32, %c0_i32_0 : i32, i32, i32
  }
}

</mosaic_0001>

<llo_original>
// kernel: tpu_custom_call.1
$region0: #{tpu_custom_call.1}
  #allocation0 [shape = 'u32[]', space=smem, size = 0x4, offset = 0x4, fixed_abs, tag = 'smem constant byte address 0x4 - core index']
  #allocation1 [shape = 'u32[72,128]{1,0:T(1,128)}', space=vmem, size = 0x9000, scoped, tag = 'internal scratch']
  %s0 = inlined_call_operand.hbm [shape: f32[3,16,256], index: 0, kind: input, shape index: {}]
  %s1 = inlined_call_operand.hbm [shape: f32[3,16,256], index: 1, kind: input, shape index: {}]
  %s2 = inlined_call_operand.hbm [shape: f32[2,1,128], index: 2, kind: output, shape index: {}]
  %s3 = sld [smem:[#allocation0]]
  $region49: #{tpu_custom_call.1} parent=0
    _
  %s5 = ssub.s32 1, %s3
  %s6 = scalar_select 0, %s5, %s3
  $region1: #{tpu_custom_call.1} parent=0
    #allocation2 [shape = 'u8[49152]{0}', space=vmem, size = 0xc000, scoped, tag = 'input window, operand 0']
    #allocation3 [shape = 's32[2]{0}', space=sflag, size = 0x8, scoped, tag = 'scoped memory for tpu_custom_call.1']
    #allocation4 [shape = 's32[2]{0}', space=sflag, size = 0x8, scoped, tag = 'scoped memory for tpu_custom_call.1']
    #allocation5 [shape = 'u8[49152]{0}', space=vmem, size = 0xc000, scoped, tag = 'input window, operand 1']
    #allocation6 [shape = 's32[2]{0}', space=sflag, size = 0x8, scoped, tag = 'scoped memory for tpu_custom_call.1']
    #allocation7 [shape = 'u8[1024]{0}', space=vmem, size = 0x400, scoped, tag = 'output window, operand 0']
    %7 = vsyncpa [#allocation3], 0
    %s8 = scalar_lea.sflag [#allocation3], 1
    %9 = vsyncpa %s8, 0
    %10 = vsyncpa [#allocation6], 0
    %s11 = scalar_lea.sflag [#allocation6], 1
    %12 = vsyncpa %s11, 0
    %13 = vsyncpa [#allocation4], 0
    %s14 = scalar_lea.sflag [#allocation4], 1
    %15 = vsyncpa %s14, 0
    loop: start=0, step=1, limit=4
    $region2: #{tpu_custom_call.1} parent=1 // loop_pre_header
      _
    $region3: #{tpu_custom_call.1} parent=1 // loop_header
      %s17 = sphi 0, %s21
      %p18 = scmp.ge.s32.totalorder %s17, 4
      %s27 = sphi 0, %s29
      %s30 = sphi 0, %s27
      %s31 = sphi 0, %s30
      %s47 = sphi 0, %s31
      %s53 = sphi 0, %s55
      %s56 = sphi 0, %s53
      %s57 = sphi 0, %s56
      %s73 = sphi 0, %s57
      %s79 = sphi 0, %s81
      %s82 = sphi 0, %s79
      %s83 = sphi 0, %s82
      %s99 = sphi 0, %s83
    $region4: #{tpu_custom_call.1} parent=1 // loop_header_branch
      %20 = sbr.rel (%p18) target = $region8
    $region5: #{tpu_custom_call.1} parent=1 // loop_body
      %s22 = ssub.s32 %s17, 1
      %s23 = ssub.s32 %s17, 2
      %s24 = sadd.s32 %s17, 1
      %s25 = ssub.s32 %s17, %s24
      %p26 = scmp.eq.s32.totalorder %s25, 0
      %s28 = sadd.s32 %s27, 1
      %s29 = scalar_select %p26, %s27, %s28
      %p32 = pneg %p26
      %p33 = scmp.eq.s32.totalorder %s17, 1
      %p34 = por %p32, %p33
      %p35 = scmp.ne.s32.totalorder %s27, %s30
      %p36 = scmp.eq.s32.totalorder %s17, 0
      %p37 = por %p35, %p36
      %p38 = scmp.ne.s32.totalorder %s27, %s30
      %p39 = scmp.eq.s32.totalorder %s22, 1
      %p40 = por %p38, %p39
      %p41 = scmp.ne.s32.totalorder %s30, %s31
      %p42 = scmp.eq.s32.totalorder %s22, 0
      %p43 = por %p41, %p42
      %p44 = scmp.ne.s32.totalorder %s30, %s31
      %p45 = scmp.eq.s32.totalorder %s23, 1
      %p46 = por %p44, %p45
      %p48 = scmp.ne.s32.totalorder %s31, %s47
      %p49 = scmp.eq.s32.totalorder %s23, 0
      %p50 = por %p48, %p49
      %s51 = ssub.s32 %s17, %s24
      %p52 = scmp.eq.s32.totalorder %s51, 0
      %s54 = sadd.s32 %s53, 1
      %s55 = scalar_select %p52, %s53, %s54
      %p58 = pneg %p52
      %p59 = scmp.eq.s32.totalorder %s17, 1
      %p60 = por %p58, %p59
      %p61 = scmp.ne.s32.totalorder %s53, %s56
      %p62 = scmp.eq.s32.totalorder %s17, 0
      %p63 = por %p61, %p62
      %p64 = scmp.ne.s32.totalorder %s53, %s56
      %p65 = scmp.eq.s32.totalorder %s22, 1
      %p66 = por %p64, %p65
      %p67 = scmp.ne.s32.totalorder %s56, %s57
      %p68 = scmp.eq.s32.totalorder %s22, 0
      %p69 = por %p67, %p68
      %p70 = scmp.ne.s32.totalorder %s56, %s57
      %p71 = scmp.eq.s32.totalorder %s23, 1
      %p72 = por %p70, %p71
      %p74 = scmp.ne.s32.totalorder %s57, %s73
      %p75 = scmp.eq.s32.totalorder %s23, 0
      %p76 = por %p74, %p75
      %s77 = ssub.s32 %s17, %s24
      %p78 = scmp.eq.s32.totalorder %s77, 0
      %s80 = sadd.s32 %s79, 1
      %s81 = scalar_select %p78, %s79, %s80
      %p84 = pneg %p78
      %p85 = scmp.eq.s32.totalorder %s17, 1
      %p86 = por %p84, %p85
      %p87 = scmp.ne.s32.totalorder %s79, %s82
      %p88 = scmp.eq.s32.totalorder %s17, 0
      %p89 = por %p87, %p88
      %p90 = scmp.ne.s32.totalorder %s79, %s82
      %p91 = scmp.eq.s32.totalorder %s22, 1
      %p92 = por %p90, %p91
      %p93 = scmp.ne.s32.totalorder %s82, %s83
      %p94 = scmp.eq.s32.totalorder %s22, 0
      %p95 = por %p93, %p94
      %p96 = scmp.ne.s32.totalorder %s82, %s83
      %p97 = scmp.eq.s32.totalorder %s23, 1
      %p98 = por %p96, %p97
      %p100 = scmp.ne.s32.totalorder %s83, %s99
      %p101 = scmp.eq.s32.totalorder %s23, 0
      %p102 = por %p100, %p101
      %p103 = scmp.le.s32.totalorder 1, %s17
      %p104 = scmp.lt.s32.totalorder %s17, 3
      %p105 = pnand %p103, %p104
      %p106 = pneg %p105
      // Predicated region
      $region9: #{tpu_custom_call.1} parent=5 // pred_check
        _
      $region10: #{tpu_custom_call.1} parent=5 // pred_check_branch
        %108 = sbr.rel (%p105) target = $region12
      $region11: #{tpu_custom_call.1} parent=5 // pred_region
        %s109 = ssub.s32 %s17, 1
      $region12: #{tpu_custom_call.1} parent=5 // pred_fallthru
        _
      %p110 = scmp.lt.s32.totalorder %s17, 2
      // Predicated region
      $region13: #{tpu_custom_call.1} parent=5 // pred_check
        %p111 = pneg %p110
      $region14: #{tpu_custom_call.1} parent=5 // pred_check_branch
        %113 = sbr.rel (%p111) target = $region16
      $region15: #{tpu_custom_call.1} parent=5 // pred_region
        // Predicated region
        $region17: #{tpu_custom_call.1} parent=15 // pred_check
          %p114 = pneg %p37
        $region18: #{tpu_custom_call.1} parent=15 // pred_check_branch
          %116 = sbr.rel (%p114) target = $region20
        $region19: #{tpu_custom_call.1} parent=15 // pred_region
          %s117 = sand.u32 %s27, 1
          %s118 = scalar_lea.sflag [#allocation3], %s117
          %s119 = sand.u32 %s27, 1
          %s120 = smul.addr %s119, 48
          %s121 = scalar_lea.vmem [#allocation2], %s120
          %123 = vsyncadd %s118, 0
          %s124 = smul.addr %s17, 2
          %s125 = smul.addr %s124, 8
          %s126 = scalar_lea.hbm %s0, %s125
          %s127 = sshll.u32 %s126, 4
          %s128 = int_to_ptr.hbm [resolvable:$true] %s127
          %s129 = sshll.u32 %s121, 4
          %s130 = int_to_ptr.vmem [resolvable:$true] %s129
          %135 = dma.hbm_to_vmem [thread:$0]  %s128, 768, %s130, %s118, 512, 256, 16
        $region20: #{tpu_custom_call.1} parent=15 // pred_fallthru
          _
        // Predicated region
        $region21: #{tpu_custom_call.1} parent=15 // pred_check
          %p136 = pneg %p63
        $region22: #{tpu_custom_call.1} parent=15 // pred_check_branch
          %138 = sbr.rel (%p136) target = $region24
        $region23: #{tpu_custom_call.1} parent=15 // pred_region
          %s139 = sand.u32 %s53, 1
          %s140 = scalar_lea.sflag [#allocation6], %s139
          %s141 = sand.u32 %s53, 1
          %s142 = smul.addr %s141, 48
          %s143 = scalar_lea.vmem [#allocation5], %s142
          %145 = vsyncadd %s140, 0
          %s146 = smul.addr %s17, 2
          %s147 = smul.addr %s146, 8
          %s148 = scalar_lea.hbm %s1, %s147
          %s149 = sshll.u32 %s148, 4
          %s150 = int_to_ptr.hbm [resolvable:$true] %s149
          %s151 = sshll.u32 %s143, 4
          %s152 = int_to_ptr.vmem [resolvable:$true] %s151
          %157 = dma.hbm_to_vmem [thread:$0]  %s150, 768, %s152, %s140, 512, 256, 16
        $region24: #{tpu_custom_call.1} parent=15 // pred_fallthru
          _
      $region16: #{tpu_custom_call.1} parent=5 // pred_fallthru
        _
      %p158 = scmp.le.s32.totalorder 1, %s17
      %p159 = scmp.lt.s32.totalorder %s17, 3
      %p160 = pnand %p158, %p159
      %p161 = pneg %p160
      // Predicated region
      $region25: #{tpu_custom_call.1} parent=5 // pred_check
        _
      $region26: #{tpu_custom_call.1} parent=5 // pred_check_branch
        %163 = sbr.rel (%p160) target = $region28
      $region27: #{tpu_custom_call.1} parent=5 // pred_region
        %s164 = ssub.s32 %s17, 1
        %s165 = sand.u32 %s30, 1
        %s166 = scalar_lea.sflag [#allocation3], %s165
        %s167 = sand.u32 %s30, 1
        %s168 = smul.addr %s167, 48
        %s169 = scalar_lea.vmem [#allocation2], %s168
        // Predicated region
        $region29: #{tpu_custom_call.1} parent=27 // pred_check
          %p170 = pneg %p43
        $region30: #{tpu_custom_call.1} parent=27 // pred_check_branch
          %172 = sbr.rel (%p170) target = $region32
        $region31: #{tpu_custom_call.1} parent=27 // pred_region
          %174 = dma.done %s166, 768
        $region32: #{tpu_custom_call.1} parent=27 // pred_fallthru
          _
        %s175 = sand.u32 %s56, 1
        %s176 = scalar_lea.sflag [#allocation6], %s175
        %s177 = sand.u32 %s56, 1
        %s178 = smul.addr %s177, 48
        %s179 = scalar_lea.vmem [#allocation5], %s178
        // Predicated region
        $region33: #{tpu_custom_call.1} parent=27 // pred_check
          %p180 = pneg %p69
        $region34: #{tpu_custom_call.1} parent=27 // pred_check_branch
          %182 = sbr.rel (%p180) target = $region36
        $region35: #{tpu_custom_call.1} parent=27 // pred_region
          %184 = dma.done %s176, 768
        $region36: #{tpu_custom_call.1} parent=27 // pred_fallthru
          _
        %s185 = sand.u32 %s30, 1
        %s186 = scalar_lea.sflag [#allocation3], %s185
        %s187 = sand.u32 %s30, 1
        %s188 = smul.addr %s187, 48
        %s189 = scalar_lea.vmem [#allocation2], %s188
        %p190 = pneg %p43
        %p191 = pneg %p40
        %s192 = sand.u32 %s56, 1
        %s193 = scalar_lea.sflag [#allocation6], %s192
        %s194 = sand.u32 %s56, 1
        %s195 = smul.addr %s194, 48
        %s196 = scalar_lea.vmem [#allocation5], %s195
        %p197 = pneg %p69
        %p198 = pneg %p66
        %p199 = pneg %p95
        %p200 = pneg %p92
        %s201 = sand.u32 %s82, 1
        %s202 = scalar_lea.sflag [#allocation4], %s201
        %s203 = sand.u32 %s82, 1
        %s204 = scalar_lea.vmem [#allocation7], %s203
        %v205 = vlaneseq
        %v206 = vand.u32 %v205, 127
        %s207 = scalar_lea.vmem %s169, 16 [#allocation2]
        %v208 = vld [vmem:[%s207] sm:$0xff]
        %v209 = vld [vmem:[%s207 + $0x8] sm:$0xff]
        %s210 = scalar_lea.vmem %s169, 32 [#allocation2]
        %v211 = vld [vmem:[%s210] sm:$0xff]
        %v212 = vld [vmem:[%s210 + $0x8] sm:$0xff]
        %215 = vrot.lane.b32.xlu0 %v211, 112
        %v216 = vpop.permute.xlu0 %215
        %217 = vrot.lane.b32.xlu0 %v212, 112
        %v218 = vpop.permute.xlu0 %217
        %vm219 = vcmask 916480
        %v220 = vsel %vm219, %v216, %v218
        %v223 = vmul.f32 %v208, %v220
        %v224 = vmul.f32 %v209, %v218
        %227 = vrot.lane.b32.xlu0 %v208, 112
        %v228 = vpop.permute.xlu0 %227
        %229 = vrot.lane.b32.xlu0 %v209, 112
        %v230 = vpop.permute.xlu0 %229
        %v231 = vsel %vm219, %v228, %v230
        %v234 = vmul.f32 %v211, %v231
        %v235 = vmul.f32 %v212, %v230
        %v236 = vsub.f32 %v223, %v234
        %v237 = vsub.f32 %v224, %v235
        %s238 = scalar_lea.vmem %s179, 16 [#allocation5]
        %v239 = vld [vmem:[%s238] sm:$0xff]
        %v240 = vld [vmem:[%s238 + $0x8] sm:$0xff]
        %s241 = scalar_lea.vmem %s179, 32 [#allocation5]
        %v242 = vld [vmem:[%s241] sm:$0xff]
        %v243 = vld [vmem:[%s241 + $0x8] sm:$0xff]
        %246 = vrot.lane.b32.xlu0 %v242, 112
        %v247 = vpop.permute.xlu0 %246
        %248 = vrot.lane.b32.xlu0 %v243, 112
        %v249 = vpop.permute.xlu0 %248
        %v250 = vsel %vm219, %v247, %v249
        %v253 = vmul.f32 %v239, %v250
        %v254 = vmul.f32 %v240, %v249
        %257 = vrot.lane.b32.xlu0 %v239, 112
        %v258 = vpop.permute.xlu0 %257
        %259 = vrot.lane.b32.xlu0 %v240, 112
        %v260 = vpop.permute.xlu0 %259
        %v261 = vsel %vm219, %v258, %v260
        %v264 = vmul.f32 %v242, %v261
        %v265 = vmul.f32 %v243, %v260
        %v266 = vsub.f32 %v253, %v264
        %v267 = vsub.f32 %v254, %v265
        %v268 = vsub.f32 %v236, %v266
        %v269 = vsub.f32 %v237, %v267
        %v270 = vand.u32 2147483647, %v268
        %v271 = vand.u32 2147483647, %v269
        %v272 = vld [vmem:[%s169] sm:$0xff]
        %v273 = vld [vmem:[%s169 + $0x8] sm:$0xff]
        %276 = vrot.lane.b32.xlu0 %v272, 112
        %v277 = vpop.permute.xlu0 %276
        %278 = vrot.lane.b32.xlu0 %v273, 112
        %v279 = vpop.permute.xlu0 %278
        %v280 = vsel %vm219, %v277, %v279
        %v283 = vmul.f32 %v211, %v280
        %v284 = vmul.f32 %v212, %v279
        %v285 = vmul.f32 %v272, %v220
        %v286 = vmul.f32 %v273, %v218
        %v287 = vsub.f32 %v283, %v285
        %v288 = vsub.f32 %v284, %v286
        %v289 = vld [vmem:[%s179] sm:$0xff]
        %v290 = vld [vmem:[%s179 + $0x8] sm:$0xff]
        %293 = vrot.lane.b32.xlu0 %v289, 112
        %v294 = vpop.permute.xlu0 %293
        %295 = vrot.lane.b32.xlu0 %v290, 112
        %v296 = vpop.permute.xlu0 %295
        %v297 = vsel %vm219, %v294, %v296
        %v300 = vmul.f32 %v242, %v297
        %v301 = vmul.f32 %v243, %v296
        %v302 = vmul.f32 %v289, %v250
        %v303 = vmul.f32 %v290, %v249
        %v304 = vsub.f32 %v300, %v302
        %v305 = vsub.f32 %v301, %v303
        %v306 = vsub.f32 %v287, %v304
        %v307 = vsub.f32 %v288, %v305
        %v308 = vand.u32 2147483647, %v306
        %v309 = vand.u32 2147483647, %v307
        %v310 = vadd.f32 %v270, %v308
        %v311 = vadd.f32 %v271, %v309
        %v312 = vmul.f32 %v272, %v231
        %v313 = vmul.f32 %v273, %v230
        %v314 = vmul.f32 %v208, %v280
        %v315 = vmul.f32 %v209, %v279
        %v316 = vsub.f32 %v312, %v314
        %v317 = vsub.f32 %v313, %v315
        %v318 = vmul.f32 %v289, %v261
        %v319 = vmul.f32 %v290, %v260
        %v320 = vmul.f32 %v239, %v297
        %v321 = vmul.f32 %v240, %v296
        %v322 = vsub.f32 %v318, %v320
        %v323 = vsub.f32 %v319, %v321
        %v324 = vsub.f32 %v316, %v322
        %v325 = vsub.f32 %v317, %v323
        %v326 = vand.u32 2147483647, %v324
        %v327 = vand.u32 2147483647, %v325
        %v328 = vadd.f32 %v310, %v326
        %v329 = vadd.f32 %v311, %v327
        %v330 = vsel %vm219, %v329, 0.0
        %v331 = vadd.f32 %v328, %v330
        %332 = vadd.xlane.f32.xlu0 %v331
        %v333 = vpop.xlane.xlu0 %332
        %v334 = vrot.slane %v333, 4
        %v335 = vadd.f32 %v333, %v334
        %v336 = vrot.slane %v335, 2
        %v337 = vadd.f32 %v335, %v336
        %v338 = vrot.slane %v337, 1
        %v339 = vadd.f32 %v337, %v338
        %vm340 = vcmp.eq.s32.totalorder %v206, 0
        %v341 = vsel %vm340, %v339, 0.0
        %v342 = vadd.f32 %v341, 0.0
        %343 = vrot.lane.b32.xlu0 %v211, 96
        %v344 = vpop.permute.xlu0 %343
        %345 = vrot.lane.b32.xlu0 %v212, 96
        %v346 = vpop.permute.xlu0 %345
        %vm347 = vcmask 785408
        %v348 = vsel %vm347, %v344, %v346
        %v351 = vmul.f32 %v208, %v348
        %v352 = vmul.f32 %v209, %v346
        %353 = vrot.lane.b32.xlu0 %v208, 96
        %v354 = vpop.permute.xlu0 %353
        %355 = vrot.lane.b32.xlu0 %v209, 96
        %v356 = vpop.permute.xlu0 %355
        %v357 = vsel %vm347, %v354, %v356
        %v360 = vmul.f32 %v211, %v357
        %v361 = vmul.f32 %v212, %v356
        %v362 = vsub.f32 %v351, %v360
        %v363 = vsub.f32 %v352, %v361
        %364 = vrot.lane.b32.xlu0 %v242, 96
        %v365 = vpop.permute.xlu0 %364
        %366 = vrot.lane.b32.xlu0 %v243, 96
        %v367 = vpop.permute.xlu0 %366
        %v368 = vsel %vm347, %v365, %v367
        %v371 = vmul.f32 %v239, %v368
        %v372 = vmul.f32 %v240, %v367
        %373 = vrot.lane.b32.xlu0 %v239, 96
        %v374 = vpop.permute.xlu0 %373
        %375 = vrot.lane.b32.xlu0 %v240, 96
        %v376 = vpop.permute.xlu0 %375
        %v377 = vsel %vm347, %v374, %v376
        %v380 = vmul.f32 %v242, %v377
        %v381 = vmul.f32 %v243, %v376
        %v382 = vsub.f32 %v371, %v380
        %v383 = vsub.f32 %v372, %v381
        %v384 = vsub.f32 %v362, %v382
        %v385 = vsub.f32 %v363, %v383
        %v386 = vand.u32 2147483647, %v384
        %v387 = vand.u32 2147483647, %v385
        %388 = vrot.lane.b32.xlu0 %v272, 96
        %v389 = vpop.permute.xlu0 %388
        %390 = vrot.lane.b32.xlu0 %v273, 96
        %v391 = vpop.permute.xlu0 %390
        %v392 = vsel %vm347, %v389, %v391
        %v395 = vmul.f32 %v211, %v392
        %v396 = vmul.f32 %v212, %v391
        %v397 = vmul.f32 %v272, %v348
        %v398 = vmul.f32 %v273, %v346
        %v399 = vsub.f32 %v395, %v397
        %v400 = vsub.f32 %v396, %v398
        %401 = vrot.lane.b32.xlu0 %v289, 96
        %v402 = vpop.permute.xlu0 %401
        %403 = vrot.lane.b32.xlu0 %v290, 96
        %v404 = vpop.permute.xlu0 %403
        %v405 = vsel %vm347, %v402, %v404
        %v408 = vmul.f32 %v242, %v405
        %v409 = vmul.f32 %v243, %v404
        %v410 = vmul.f32 %v289, %v368
        %v411 = vmul.f32 %v290, %v367
        %v412 = vsub.f32 %v408, %v410
        %v413 = vsub.f32 %v409, %v411
        %v414 = vsub.f32 %v399, %v412
        %v415 = vsub.f32 %v400, %v413
        %v416 = vand.u32 2147483647, %v414
        %v417 = vand.u32 2147483647, %v415
        %v418 = vadd.f32 %v386, %v416
        %v419 = vadd.f32 %v387, %v417
        %v420 = vmul.f32 %v272, %v357
        %v421 = vmul.f32 %v273, %v356
        %v422 = vmul.f32 %v208, %v392
        %v423 = vmul.f32 %v209, %v391
        %v424 = vsub.f32 %v420, %v422
        %v425 = vsub.f32 %v421, %v423
        %v426 = vmul.f32 %v289, %v377
        %v427 = vmul.f32 %v290, %v376
        %v428 = vmul.f32 %v239, %v405
        %v429 = vmul.f32 %v240, %v404
        %v430 = vsub.f32 %v426, %v428
        %v431 = vsub.f32 %v427, %v429
        %v432 = vsub.f32 %v424, %v430
        %v433 = vsub.f32 %v425, %v431
        %v434 = vand.u32 2147483647, %v432
        %v435 = vand.u32 2147483647, %v433
        %v436 = vadd.f32 %v418, %v434
        %v437 = vadd.f32 %v419, %v435
        %v438 = vsel %vm347, %v437, 0.0
        %v439 = vadd.f32 %v436, %v438
        %440 = vadd.xlane.f32.xlu0 %v439
        %v441 = vpop.xlane.xlu0 %440
        %v442 = vrot.slane %v441, 4
        %v443 = vadd.f32 %v441, %v442
        %v444 = vrot.slane %v443, 2
        %v445 = vadd.f32 %v443, %v444
        %v446 = vrot.slane %v445, 1
        %v447 = vadd.f32 %v445, %v446
        %vm448 = vcmp.eq.s32.totalorder %v206, 1
        %v449 = vsel %vm448, %v447, 0.0
        %v450 = vadd.f32 %v342, %v449
        %451 = vst [vmem:[%s204] sm:$0x1] %v450
        %s452 = sand.u32 %s82, 1
        %s453 = scalar_lea.sflag [#allocation4], %s452
        %s454 = sand.u32 %s82, 1
        %s455 = scalar_lea.vmem [#allocation7], %s454
        // Predicated region
        $region37: #{tpu_custom_call.1} parent=27 // pred_check
          %p456 = pneg %p92
        $region38: #{tpu_custom_call.1} parent=27 // pred_check_branch
          %458 = sbr.rel (%p456) target = $region40
        $region39: #{tpu_custom_call.1} parent=27 // pred_region
          %460 = vsyncadd %s453, 0
          %s461 = scalar_lea.hbm %s2, %s22
          %s463 = sshll.u32 %s455, 4
          %s464 = int_to_ptr.vmem [resolvable:$true] %s463
          %s465 = sshll.u32 %s461, 4
          %s466 = int_to_ptr.hbm [resolvable:$true] %s465
          %468 = dma.vmem_to_hbm [thread:$0]  %s464, 16, %s466, %s453
        $region40: #{tpu_custom_call.1} parent=27 // pred_fallthru
          _
      $region28: #{tpu_custom_call.1} parent=5 // pred_fallthru
        _
      %p469 = scmp.le.s32.totalorder 2, %s17
      // Predicated region
      $region41: #{tpu_custom_call.1} parent=5 // pred_check
        %p470 = pneg %p469
      $region42: #{tpu_custom_call.1} parent=5 // pred_check_branch
        %472 = sbr.rel (%p470) target = $region44
      $region43: #{tpu_custom_call.1} parent=5 // pred_region
        %s473 = ssub.s32 %s17, 2
        // Predicated region
        $region45: #{tpu_custom_call.1} parent=43 // pred_check
          %p474 = pneg %p98
        $region46: #{tpu_custom_call.1} parent=43 // pred_check_branch
          %476 = sbr.rel (%p474) target = $region48
        $region47: #{tpu_custom_call.1} parent=43 // pred_region
          %s477 = sand.u32 %s83, 1
          %s478 = scalar_lea.sflag [#allocation4], %s477
          %s479 = sand.u32 %s83, 1
          %s480 = scalar_lea.vmem [#allocation7], %s479
          %482 = dma.done %s478, 16
        $region48: #{tpu_custom_call.1} parent=43 // pred_fallthru
          _
      $region44: #{tpu_custom_call.1} parent=5 // pred_fallthru
        _
    $region6: #{tpu_custom_call.1} parent=1 // loop_footer
      %s21 = sadd.s32 1, %s17
    $region7: #{tpu_custom_call.1} parent=1 // loop_footer_branch
      %16 = sbr.rel target = $region3
    $region8: #{tpu_custom_call.1} parent=1 // loop_exit
      _
    %483 = vsyncpa [#allocation3], 1
    %s484 = scalar_lea.sflag [#allocation3], 1
    %485 = vsyncpa %s484, 1
    %486 = vsyncpa [#allocation6], 1
    %s487 = scalar_lea.sflag [#allocation6], 1
    %488 = vsyncpa %s487, 1
    %489 = vsyncpa [#allocation4], 1
    %s490 = scalar_lea.sflag [#allocation4], 1
    %491 = vsyncpa %s490, 1

</llo_original>
